<compile_context>
chip_gen: v7x
topology: tpu7x:2x2x1
jax: 0.10.0
libtpu: 0.0.40
codegen_flags: <defaults>
</compile_context>

<pallas_src>
import jax
import jax.numpy as jnp
from jax.experimental import pallas as pl
from jax.experimental.pallas import tpu as pltpu


def _rpn_cls_kernel(p_ref, w_ref, b_ref, o_ref):
    # p_ref: (B, 9*C, H*W)  im2col patches, spatial dim in lanes (lane-dense)
    # w_ref: (54, 9*C)      [conv1; conv2] weights, 3x3 taps folded into K
    # b_ref: (54, 1)        [bias1; bias2]
    # o_ref: (B, 54, H*W)   channel-major output == flattened NCHW (lane-dense)
    w = w_ref[...]            # (54, 9C)   hoisted out of the batch loop
    b = b_ref[...]            # (54, 1)
    for bi in range(p_ref.shape[0]):          # static, small batch block
        # Single MXU matmul per image: (54, 9C) x (9C, H*W) -> (54, H*W), f32 acc.
        acc = jnp.dot(w, p_ref[bi], preferred_element_type=jnp.float32)
        o_ref[bi] = (acc + b).astype(o_ref.dtype)


def rpn_classifier_forward(x_nchw, w1, b1, w2, b2, *, batch_block=1):
    """Forward pass of _RPNClassifier.

    Args:
      x_nchw: (N, C, H, W) float32 — PyTorch NCHW input.
      w1: (18, C, 3, 3), b1: (18,) — conv m1 params (PyTorch OIHW layout).
      w2: (36, C, 3, 3), b2: (36,) — conv m2 params.
      batch_block: images per grid step (keep 1 for small N so the parallel
        grid axis has extent >= 2; raise for large N to amortize step overhead).
    Returns:
      (y1, y2) in NCHW: (N, 18, H, W), (N, 36, H, W).
    """
    N, C, H, W = x_nchw.shape
    co1, co2 = w1.shape[0], w2.shape[0]
    co = co1 + co2

    # ---- layout plumbing only (no arithmetic): padding, im2col, weight fold ----
    x_pad = jnp.pad(x_nchw, ((0, 0), (0, 0), (1, 1), (1, 1)))      # (N,C,H+2,W+2)
    shifts = [x_pad[:, :, kh:kh + H, kw:kw + W]                    # 9 x (N,C,H,W)
              for kh in range(3) for kw in range(3)]
    # patches[n, (kh*3+kw)*C + ci, h*W + w] = x_pad[n, ci, h+kh, w+kw]
    patches = jnp.stack(shifts, axis=1).reshape(N, 9 * C, H * W)   # (N, 9C, HW)

    w_cat = jnp.concatenate([w1, w2], axis=0)                      # (54, C, 3, 3)
    # w_flat[o, kh*3C + kw*C + ci] = w_cat[o, ci, kh, kw]  (matches patch order)
    w_flat = jnp.transpose(w_cat, (0, 2, 3, 1)).reshape(co, 9 * C) # (54, 9C)
    b_cat = jnp.concatenate([b1, b2], axis=0).reshape(co, 1)       # (54, 1)

    bb = batch_block
    if N % bb != 0:
        bb = 1
    grid = (N // bb,)

    grid_spec = pltpu.PrefetchScalarGridSpec(
        num_scalar_prefetch=0,
        grid=grid,
        in_specs=[
            pl.BlockSpec((bb, 9 * C, H * W), lambda i: (i, 0, 0)),  # patches
            pl.BlockSpec((co, 9 * C), lambda i: (0, 0)),            # fused weights
            pl.BlockSpec((co, 1), lambda i: (0, 0)),                # fused bias
        ],
        out_specs=pl.BlockSpec((bb, co, H * W), lambda i: (i, 0, 0)),
    )

    out = pl.pallas_call(
        _rpn_cls_kernel,
        out_shape=jax.ShapeDtypeStruct((N, co, H * W), jnp.float32),
        grid_spec=grid_spec,
        compiler_params=pltpu.CompilerParams(
            dimension_semantics=("parallel",)),
    )(patches, w_flat, b_cat)

    y = out.reshape(N, co, H, W)            # already NCHW: free reshape, no transpose
    return y[:, :co1], y[:, co1:]


def _conv_ref(x_nchw, w, b):
    # Reference conv (NCHW, OIHW) using lax, for correctness checking only.
    out = jax.lax.conv_general_dilated(
        x_nchw, w, window_strides=(1, 1), padding=((1, 1), (1, 1)),
        dimension_numbers=("NCHW", "OIHW", "NCHW"))
    return out + b.reshape(1, -1, 1, 1)


if __name__ == "__main__":
    key = jax.random.PRNGKey(0)
    n_in = 4           # `n` in _RPNClassifier.__init__
    N, H, W = 2, 16, 16

    k_x, k_w1, k_b1, k_w2, k_b2 = jax.random.split(key, 5)
    x = jax.random.normal(k_x, (N, n_in, H, W), dtype=jnp.float32)
    # Deterministic synthetic parameters (shapes from nn.Conv2d(n, 18/36, 3, 1, 1)).
    w1 = jax.random.normal(k_w1, (18, n_in, 3, 3), dtype=jnp.float32) * 0.1
    b1 = jax.random.normal(k_b1, (18,), dtype=jnp.float32) * 0.1
    w2 = jax.random.normal(k_w2, (36, n_in, 3, 3), dtype=jnp.float32) * 0.1
    b2 = jax.random.normal(k_b2, (36,), dtype=jnp.float32) * 0.1

    fwd = jax.jit(rpn_classifier_forward)
    y1, y2 = fwd(x, w1, b1, w2, b2)
    jax.block_until_ready((y1, y2))

    # Sanity check against a pure-JAX reference conv.
    r1 = _conv_ref(x, w1, b1)
    r2 = _conv_ref(x, w2, b2)
    assert y1.shape == (N, 18, H, W) and y2.shape == (N, 36, H, W)
    assert jnp.allclose(y1, r1, atol=1e-4, rtol=1e-4)
    assert jnp.allclose(y2, r2, atol=1e-4, rtol=1e-4)

    print("KERNEL_OK")
</pallas_src>

<mosaic_0001>
module attributes {stable_mosaic.version = 11 : i64} {
  func.func @_rpn_cls_kernel(%arg0: i32, %arg1: memref<1x36x256xf32, #tpu.memory_space<vmem>>, %arg2: memref<54x36xf32, #tpu.memory_space<vmem>>, %arg3: memref<54x1xf32, #tpu.memory_space<vmem>>, %arg4: memref<1x54x256xf32, #tpu.memory_space<vmem>>) attributes {dimension_semantics = [#tpu.dimension_semantics<parallel>], iteration_bounds = array<i64: 2>, scalar_prefetch = 0 : i64, scratch_operands = 0 : i64, tpu.core_type = #tpu.core_type<tc>, window_params = [{transform_indices = @transform_0, window_bounds = array<i64: 1, 36, 256>}, {pipeline_mode = #tpu.pipeline_mode<synchronous>, transform_indices = @transform_1, window_bounds = array<i64: 54, 36>}, {pipeline_mode = #tpu.pipeline_mode<synchronous>, transform_indices = @transform_2, window_bounds = array<i64: 54, 1>}, {transform_indices = @transform_3, window_bounds = array<i64: 1, 54, 256>}]} {
    %c0 = arith.constant 0 : index
    %c0_0 = arith.constant 0 : index
    %0 = vector.load %arg2[%c0, %c0_0] : memref<54x36xf32, #tpu.memory_space<vmem>>, vector<54x36xf32>
    %c0_1 = arith.constant 0 : index
    %c0_2 = arith.constant 0 : index
    %1 = vector.load %arg3[%c0_1, %c0_2] : memref<54x1xf32, #tpu.memory_space<vmem>>, vector<54x1xf32>
    %c0_3 = arith.constant 0 : index
    %c0_4 = arith.constant 0 : index
    %c0_5 = arith.constant 0 : index
    %2 = vector.load %arg1[%c0_3, %c0_4, %c0_5] : memref<1x36x256xf32, #tpu.memory_space<vmem>>, vector<1x36x256xf32>
    %3 = vector.shape_cast %2 : vector<1x36x256xf32> to vector<36x256xf32>
    %cst = arith.constant dense<0.000000e+00> : vector<54x256xf32>
    %4 = tpu.matmul %0, %3, %cst {dimension_numbers = #tpu.dot_dimension_numbers<[1], [0], [0], [1], [0, 0, 1, 1], [], []>} : vector<54x36xf32>, vector<36x256xf32>, vector<54x256xf32> -> vector<54x256xf32>
    %5 = vector.broadcast %1 : vector<54x1xf32> to vector<54x256xf32>
    %6 = arith.addf %4, %5 : vector<54x256xf32>
    %c0_6 = arith.constant 0 : index
    %c0_7 = arith.constant 0 : index
    %c0_8 = arith.constant 0 : index
    %7 = vector.load %arg4[%c0_6, %c0_7, %c0_8] : memref<1x54x256xf32, #tpu.memory_space<vmem>>, vector<1x54x256xf32>
    %8 = vector.shape_cast %7 : vector<1x54x256xf32> to vector<54x256xf32>
    %9 = vector.shape_cast %6 : vector<54x256xf32> to vector<1x54x256xf32>
    tpu.vector_store %arg4[%c0_6, %c0_7, %c0_8], %9 {strides = array<i32>} : memref<1x54x256xf32, #tpu.memory_space<vmem>>, vector<1x54x256xf32>,
    return
  }
  func.func @transform_0(%arg0: i32) -> (i32, i32, i32) {
    %c0_i32 = arith.constant 0 : i32
    %c0_i32_0 = arith.constant 0 : i32
    %c0_i32_1 = arith.constant 0 : i32
    return %arg0, %c0_i32, %c0_i32_0 : i32, i32, i32
  }
  func.func @transform_1(%arg0: i32) -> (i32, i32) {
    %c0_i32 = arith.constant 0 : i32
    %c0_i32_0 = arith.constant 0 : i32
    %c0_i32_1 = arith.constant 0 : i32
    return %c0_i32, %c0_i32_0 : i32, i32
  }
  func.func @transform_2(%arg0: i32) -> (i32, i32) {
    %c0_i32 = arith.constant 0 : i32
    %c0_i32_0 = arith.constant 0 : i32
    %c0_i32_1 = arith.constant 0 : i32
    return %c0_i32, %c0_i32_0 : i32, i32
  }
  func.func @transform_3(%arg0: i32) -> (i32, i32, i32) {
    %c0_i32 = arith.constant 0 : i32
    %c0_i32_0 = arith.constant 0 : i32
    %c0_i32_1 = arith.constant 0 : i32
    return %arg0, %c0_i32, %c0_i32_0 : i32, i32, i32
  }
}

</mosaic_0001>

<llo_original>
// kernel: rpn_classifier_forward.1
$region0: #{rpn_classifier_forward.1}
  #allocation0 [shape = 'u32[]', space=smem, size = 0x4, offset = 0x4, fixed_abs, tag = 'smem constant byte address 0x4 - core index']
  #allocation1 [shape = 'u32[144,128]{1,0:T(1,128)}', space=vmem, size = 0x12000, scoped, tag = 'internal scratch']
  %s0 = inlined_call_operand.vmem [shape: f32[2,36,256], index: 0, kind: input, shape index: {}]
  %s1 = inlined_call_operand.vmem [shape: f32[54,36], index: 1, kind: input, shape index: {}]
  %s2 = inlined_call_operand.vmem [shape: f32[54,1], index: 2, kind: input, shape index: {}]
  %s3 = inlined_call_operand.vmem [shape: f32[2,54,256], index: 3, kind: output, shape index: {}]
  %s4 = sld [smem:[#allocation0]]
  $region45: #{rpn_classifier_forward.1} parent=0
    _
  %s6 = ssub.s32 1, %s4
  %s7 = scalar_select 0, %s6, %s4
  loop: start=0, step=1, limit=4
  $region2: #{rpn_classifier_forward.1} parent=0 // loop_pre_header
    _
  $region3: #{rpn_classifier_forward.1} parent=0 // loop_header
    %s9 = sphi 0, %s13
    %p10 = scmp.ge.s32.totalorder %s9, 4
    %s19 = sphi 0, %s21
    %s22 = sphi 0, %s19
    %s23 = sphi 0, %s22
    %s39 = sphi 0, %s23
    %s43 = sphi 0, %s43
    %s45 = sphi 0, %s43
    %s46 = sphi 0, %s45
    %s60 = sphi 0, %s46
    %s64 = sphi 0, %s64
    %s66 = sphi 0, %s64
    %s67 = sphi 0, %s66
    %s81 = sphi 0, %s67
    %s87 = sphi 0, %s89
    %s90 = sphi 0, %s87
    %s91 = sphi 0, %s90
    %s107 = sphi 0, %s91
  $region4: #{rpn_classifier_forward.1} parent=0 // loop_header_branch
    %12 = sbr.rel (%p10) target = $region8
  $region5: #{rpn_classifier_forward.1} parent=0 // loop_body
    %s14 = ssub.s32 %s9, 1
    %s15 = ssub.s32 %s9, 2
    %s16 = sadd.s32 %s9, 1
    %s17 = ssub.s32 %s9, %s16
    %p18 = scmp.eq.s32.totalorder %s17, 0
    %s20 = sadd.s32 %s19, 1
    %s21 = scalar_select %p18, %s19, %s20
    %p24 = pneg %p18
    %p25 = scmp.eq.s32.totalorder %s9, 1
    %p26 = por %p24, %p25
    %p27 = scmp.ne.s32.totalorder %s19, %s22
    %p28 = scmp.eq.s32.totalorder %s9, 0
    %p29 = por %p27, %p28
    %p30 = scmp.ne.s32.totalorder %s19, %s22
    %p31 = scmp.eq.s32.totalorder %s14, 1
    %p32 = por %p30, %p31
    %p33 = scmp.ne.s32.totalorder %s22, %s23
    %p34 = scmp.eq.s32.totalorder %s14, 0
    %p35 = por %p33, %p34
    %p36 = scmp.ne.s32.totalorder %s22, %s23
    %p37 = scmp.eq.s32.totalorder %s15, 1
    %p38 = por %p36, %p37
    %p40 = scmp.ne.s32.totalorder %s23, %s39
    %p41 = scmp.eq.s32.totalorder %s15, 0
    %p42 = por %p40, %p41
    %s44 = sadd.s32 %s43, 1
    %p47 = scmp.eq.s32.totalorder %s9, 1
    %p48 = scmp.ne.s32.totalorder %s43, %s45
    %p49 = scmp.eq.s32.totalorder %s9, 0
    %p50 = por %p48, %p49
    %p51 = scmp.ne.s32.totalorder %s43, %s45
    %p52 = scmp.eq.s32.totalorder %s14, 1
    %p53 = por %p51, %p52
    %p54 = scmp.ne.s32.totalorder %s45, %s46
    %p55 = scmp.eq.s32.totalorder %s14, 0
    %p56 = por %p54, %p55
    %p57 = scmp.ne.s32.totalorder %s45, %s46
    %p58 = scmp.eq.s32.totalorder %s15, 1
    %p59 = por %p57, %p58
    %p61 = scmp.ne.s32.totalorder %s46, %s60
    %p62 = scmp.eq.s32.totalorder %s15, 0
    %p63 = por %p61, %p62
    %s65 = sadd.s32 %s64, 1
    %p68 = scmp.eq.s32.totalorder %s9, 1
    %p69 = scmp.ne.s32.totalorder %s64, %s66
    %p70 = scmp.eq.s32.totalorder %s9, 0
    %p71 = por %p69, %p70
    %p72 = scmp.ne.s32.totalorder %s64, %s66
    %p73 = scmp.eq.s32.totalorder %s14, 1
    %p74 = por %p72, %p73
    %p75 = scmp.ne.s32.totalorder %s66, %s67
    %p76 = scmp.eq.s32.totalorder %s14, 0
    %p77 = por %p75, %p76
    %p78 = scmp.ne.s32.totalorder %s66, %s67
    %p79 = scmp.eq.s32.totalorder %s15, 1
    %p80 = por %p78, %p79
    %p82 = scmp.ne.s32.totalorder %s67, %s81
    %p83 = scmp.eq.s32.totalorder %s15, 0
    %p84 = por %p82, %p83
    %s85 = ssub.s32 %s9, %s16
    %p86 = scmp.eq.s32.totalorder %s85, 0
    %s88 = sadd.s32 %s87, 1
    %s89 = scalar_select %p86, %s87, %s88
    %p92 = pneg %p86
    %p93 = scmp.eq.s32.totalorder %s9, 1
    %p94 = por %p92, %p93
    %p95 = scmp.ne.s32.totalorder %s87, %s90
    %p96 = scmp.eq.s32.totalorder %s9, 0
    %p97 = por %p95, %p96
    %p98 = scmp.ne.s32.totalorder %s87, %s90
    %p99 = scmp.eq.s32.totalorder %s14, 1
    %p100 = por %p98, %p99
    %p101 = scmp.ne.s32.totalorder %s90, %s91
    %p102 = scmp.eq.s32.totalorder %s14, 0
    %p103 = por %p101, %p102
    %p104 = scmp.ne.s32.totalorder %s90, %s91
    %p105 = scmp.eq.s32.totalorder %s15, 1
    %p106 = por %p104, %p105
    %p108 = scmp.ne.s32.totalorder %s91, %s107
    %p109 = scmp.eq.s32.totalorder %s15, 0
    %p110 = por %p108, %p109
    %p111 = scmp.le.s32.totalorder 1, %s9
    %p112 = scmp.lt.s32.totalorder %s9, 3
    %p113 = pnand %p111, %p112
    %p114 = pneg %p113
    // Predicated region
    $region9: #{rpn_classifier_forward.1} parent=5 // pred_check
      _
    $region10: #{rpn_classifier_forward.1} parent=5 // pred_check_branch
      %116 = sbr.rel (%p113) target = $region12
    $region11: #{rpn_classifier_forward.1} parent=5 // pred_region
      %s117 = ssub.s32 %s9, 1
      // Predicated region
      $region13: #{rpn_classifier_forward.1} parent=11 // pred_check
        %p118 = pneg %p56
      $region14: #{rpn_classifier_forward.1} parent=11 // pred_check_branch
        %120 = sbr.rel (%p118) target = $region16
      $region15: #{rpn_classifier_forward.1} parent=11 // pred_region
        _
      $region16: #{rpn_classifier_forward.1} parent=11 // pred_fallthru
        _
      // Predicated region
      $region17: #{rpn_classifier_forward.1} parent=11 // pred_check
        %p121 = pneg %p77
      $region18: #{rpn_classifier_forward.1} parent=11 // pred_check_branch
        %123 = sbr.rel (%p121) target = $region20
      $region19: #{rpn_classifier_forward.1} parent=11 // pred_region
        _
      $region20: #{rpn_classifier_forward.1} parent=11 // pred_fallthru
        _
    $region12: #{rpn_classifier_forward.1} parent=5 // pred_fallthru
      _
    %p124 = scmp.lt.s32.totalorder %s9, 2
    // Predicated region
    $region21: #{rpn_classifier_forward.1} parent=5 // pred_check
      %p125 = pneg %p124
    $region22: #{rpn_classifier_forward.1} parent=5 // pred_check_branch
      %127 = sbr.rel (%p125) target = $region24
    $region23: #{rpn_classifier_forward.1} parent=5 // pred_region
      // Predicated region
      $region25: #{rpn_classifier_forward.1} parent=23 // pred_check
        %p128 = pneg %p29
      $region26: #{rpn_classifier_forward.1} parent=23 // pred_check_branch
        %130 = sbr.rel (%p128) target = $region28
      $region27: #{rpn_classifier_forward.1} parent=23 // pred_region
        %p131 = scmp.lt.s32.totalorder %s9, 1
        %s132 = scalar_select %p131, %s9, 1
        %s133 = smul.addr %s132, 10
        %s134 = smul.addr %s133, 8
        %s135 = scalar_lea.vmem %s0, %s134
      $region28: #{rpn_classifier_forward.1} parent=23 // pred_fallthru
        _
    $region24: #{rpn_classifier_forward.1} parent=5 // pred_fallthru
      _
    %p136 = scmp.le.s32.totalorder 1, %s9
    %p137 = scmp.lt.s32.totalorder %s9, 3
    %p138 = pnand %p136, %p137
    %p139 = pneg %p138
    // Predicated region
    $region29: #{rpn_classifier_forward.1} parent=5 // pred_check
      _
    $region30: #{rpn_classifier_forward.1} parent=5 // pred_check_branch
      %141 = sbr.rel (%p138) target = $region32
    $region31: #{rpn_classifier_forward.1} parent=5 // pred_region
      %s142 = ssub.s32 %s9, 1
      %p143 = scmp.lt.s32.totalorder %s14, 1
      %s144 = scalar_select %p143, %s14, 1
      %s145 = smul.addr %s144, 10
      %s146 = smul.addr %s145, 8
      %s147 = scalar_lea.vmem %s0, %s146
      %p148 = pneg %p35
      %p149 = pneg %p32
      %p150 = pneg %p56
      %p151 = pneg %p53
      %p152 = pneg %p77
      %p153 = pneg %p74
      %p154 = pneg %p103
      %p155 = pneg %p100
      %p156 = scmp.lt.s32.totalorder %s14, 1
      %s157 = scalar_select %p156, %s14, 1
      %s158 = smul.addr %s157, 14
      %s159 = smul.addr %s158, 8
      %s160 = scalar_lea.vmem %s3, %s159
      %p161 = scmp.lt.s32.totalorder %s14, 1
      %s162 = scalar_select %p161, %s14, 1
      %s163 = smul.addr %s162, 10
      %s164 = smul.addr %s163, 8
      %s165 = scalar_lea.vmem %s0, %s164
      %p166 = scmp.lt.s32.totalorder %s14, 1
      %s167 = scalar_select %p166, %s14, 1
      %s168 = smul.addr %s167, 14
      %s169 = smul.addr %s168, 8
      %s170 = scalar_lea.vmem %s3, %s169
      %v171 = vld [vmem:[%s1] sm:$0xff]
      %v172 = vld [vmem:[%s1 + $0x8] sm:$0xff]
      %v173 = vld [vmem:[%s1 + $0x10] sm:$0xff]
      %v174 = vld [vmem:[%s1 + $0x18] sm:$0xff]
      %v175 = vld [vmem:[%s1 + $0x20] sm:$0xff]
      %v176 = vld [vmem:[%s1 + $0x28] sm:$0xff]
      %v177 = vld [vmem:[%s1 + $0x30] sm:$0x3f]
      %v178 = vld [vmem:[%s2] sm:$0xff]
      %v179 = vld [vmem:[%s2 + $0x8] sm:$0xff]
      %v180 = vld [vmem:[%s2 + $0x10] sm:$0xff]
      %v181 = vld [vmem:[%s2 + $0x18] sm:$0xff]
      %v182 = vld [vmem:[%s2 + $0x20] sm:$0xff]
      %v183 = vld [vmem:[%s2 + $0x28] sm:$0xff]
      %v184 = vld [vmem:[%s2 + $0x30] sm:$0x3f]
      %v185 = vld [vmem:[%s165] sm:$0xff]
      %v186 = vld [vmem:[%s165 + $0x8] sm:$0xff]
      %v187 = vld [vmem:[%s165 + $0x10] sm:$0xff]
      %v188 = vld [vmem:[%s165 + $0x18] sm:$0xff]
      %v189 = vld [vmem:[%s165 + $0x20] sm:$0xff]
      %v190 = vld [vmem:[%s165 + $0x28] sm:$0xff]
      %v191 = vld [vmem:[%s165 + $0x30] sm:$0xff]
      %v192 = vld [vmem:[%s165 + $0x38] sm:$0xff]
      %v193 = vld [vmem:[%s165 + $0x40] sm:$0xf]
      %v194 = vld [vmem:[%s165 + $0x48] sm:$0xf]
      %196 = vset.pattern.permute.xlu0 0
      %197 = vperm.xlu0 %196, %v178
      %v198 = vpop.permute.xlu0 %197
      %201 = vset.pattern.permute.xlu0 0
      %202 = vperm.xlu0 %201, %v179
      %v203 = vpop.permute.xlu0 %202
      %206 = vset.pattern.permute.xlu0 0
      %207 = vperm.xlu0 %206, %v180
      %v208 = vpop.permute.xlu0 %207
      %211 = vset.pattern.permute.xlu0 0
      %212 = vperm.xlu0 %211, %v181
      %v213 = vpop.permute.xlu0 %212
      %216 = vset.pattern.permute.xlu0 0
      %217 = vperm.xlu0 %216, %v182
      %v218 = vpop.permute.xlu0 %217
      %221 = vset.pattern.permute.xlu0 0
      %222 = vperm.xlu0 %221, %v183
      %v223 = vpop.permute.xlu0 %222
      %226 = vset.pattern.permute.xlu0 0
      %227 = vperm.xlu0 %226, %v184
      %v228 = vpop.permute.xlu0 %227
      %vm230 = vcmask 293888
      %v232 = vsel %vm230, %v171, 0
      %v235 = vsel %vm230, %v172, 0
      %v238 = vsel %vm230, %v173, 0
      %v241 = vsel %vm230, %v174, 0
      %v244 = vsel %vm230, %v175, 0
      %v247 = vsel %vm230, %v176, 0
      %v250 = vsel %vm230, %v177, 0
      %vm252 = vcmask 1043456
      %v254 = vsel %vm252, %v193, 0
      %v257 = vsel %vm252, %v194, 0
      %259 = vmatprep.subr.mxu0 %v186
      %260 = vmatpush1.msra.mxu0 %v185
      %261 = vmatprep.subr.mxu0 %v188
      %262 = vmatpush1.msra.mxu0 %v187
      %263 = vmatprep.subr.mxu0 %v190
      %264 = vmatpush1.msra.mxu0 %v189
      %265 = vmatprep.subr.mxu0 %v192
      %266 = vmatpush1.msra.mxu0 %v191
      %267 = vmatprep.subr.mxu0 %v257
      %268 = vmatpush1.msra.mxu0 %v254
      %269 = vmatprep.subr.mxu0 0.0
      %270 = vmatpush1.msra.mxu0 0.0
      %271 = vmatprep.subr.mxu0 0.0
      %272 = vmatpush1.msra.mxu0 0.0
      %273 = vmatprep.subr.mxu0 0.0
      %274 = vmatpush1.msra.mxu0 0.0
      %275 = vmatprep.subr.mxu0 0.0
      %276 = vmatpush1.msra.mxu0 0.0
      %277 = vmatprep.subr.mxu0 0.0
      %278 = vmatpush1.msra.mxu0 0.0
      %279 = vmatprep.subr.mxu0 0.0
      %280 = vmatpush1.msra.mxu0 0.0
      %281 = vmatprep.subr.mxu0 0.0
      %282 = vmatpush1.msra.mxu0 0.0
      %283 = vmatprep.subr.mxu0 0.0
      %284 = vmatpush1.msra.mxu0 0.0
      %285 = vmatprep.subr.mxu0 0.0
      %286 = vmatpush1.msra.mxu0 0.0
      %287 = vmatprep.subr.mxu0 0.0
      %288 = vmatpush1.msra.mxu0 0.0
      %289 = vmatprep.subr.mxu0 0.0
      %290 = vmatpush1.msra.mxu0 0.0
      %291 = vmatprep.subr.mxu0 0.0
      %292 = vmatpush1.msra.mxu0 0.0
      %293 = vmatprep.subr.mxu0 0.0
      %294 = vmatpush1.msra.mxu0 0.0
      %295 = vmatprep.subr.mxu0 0.0
      %296 = vmatpush1.msra.mxu0 0.0
      %297 = vmatprep.subr.mxu0 0.0
      %298 = vmatpush1.msra.mxu0 0.0
      %299 = vmatprep.subr.mxu0 0.0
      %300 = vmatpush1.msra.mxu0 0.0
      %301 = vmatprep.subr.mxu0 0.0
      %302 = vmatpush1.msra.mxu0 0.0
      %303 = vmatprep.subr.mxu0 0.0
      %304 = vmatpush1.msra.mxu0 0.0
      %305 = vmatprep.subr.mxu0 0.0
      %306 = vmatpush1.msra.mxu0 0.0
      %307 = vmatprep.subr.mxu0 0.0
      %308 = vmatpush1.msra.mxu0 0.0
      %309 = vmatprep.subr.mxu0 0.0
      %310 = vmatpush1.msra.mxu0 0.0
      %311 = vmatprep.subr.mxu0 0.0
      %312 = vmatpush1.msra.mxu0 0.0
      %313 = vmatprep.subr.mxu0 0.0
      %314 = vmatpush1.msra.mxu0 0.0
      %315 = vmatprep.subr.mxu0 0.0
      %316 = vmatpush1.msra.mxu0 0.0
      %317 = vmatprep.subr.mxu0 0.0
      %318 = vmatpush1.msra.mxu0 0.0
      %319 = vmatprep.subr.mxu0 0.0
      %320 = vmatpush1.msra.mxu0 0.0
      %321 = vmatprep.subr.mxu0 0.0
      %322 = vmatpush1.msra.mxu0 0.0
      %323 = vmatprep.mubr.f32.mxu0 0.0
      %324 = vmatmul.mubr.f32.gmra.mrb[0].mxu0 %v232
      %v325 = vpop.f32.mrb[0].mxu0
      %v326 = vadd.f32 %v198, %v325
      %v327 = vpop.f32.mrb[0].mxu0
      %v328 = vadd.f32 %v198, %v327
      %329 = vmatprep.mubr.f32.mxu0 0.0
      %330 = vmatmul.mubr.f32.gmra.mrb[0].mxu0 %v235
      %v331 = vpop.f32.mrb[0].mxu0
      %v332 = vadd.f32 %v203, %v331
      %v333 = vpop.f32.mrb[0].mxu0
      %v334 = vadd.f32 %v203, %v333
      %335 = vmatprep.mubr.f32.mxu0 0.0
      %336 = vmatmul.mubr.f32.gmra.mrb[0].mxu0 %v238
      %v337 = vpop.f32.mrb[0].mxu0
      %v338 = vadd.f32 %v208, %v337
      %v339 = vpop.f32.mrb[0].mxu0
      %v340 = vadd.f32 %v208, %v339
      %341 = vmatprep.mubr.f32.mxu0 0.0
      %342 = vmatmul.mubr.f32.gmra.mrb[0].mxu0 %v241
      %v343 = vpop.f32.mrb[0].mxu0
      %v344 = vadd.f32 %v213, %v343
      %v345 = vpop.f32.mrb[0].mxu0
      %v346 = vadd.f32 %v213, %v345
      %347 = vmatprep.mubr.f32.mxu0 0.0
      %348 = vmatmul.mubr.f32.gmra.mrb[0].mxu0 %v244
      %v349 = vpop.f32.mrb[0].mxu0
      %v350 = vadd.f32 %v218, %v349
      %v351 = vpop.f32.mrb[0].mxu0
      %v352 = vadd.f32 %v218, %v351
      %353 = vmatprep.mubr.f32.mxu0 0.0
      %354 = vmatmul.mubr.f32.gmra.mrb[0].mxu0 %v247
      %v355 = vpop.f32.mrb[0].mxu0
      %v356 = vadd.f32 %v223, %v355
      %v357 = vpop.f32.mrb[0].mxu0
      %v358 = vadd.f32 %v223, %v357
      %359 = vmatprep.mubr.f32.mxu0 0.0
      %360 = vmatmul.mubr.f32.gmra.mrb[0].mxu0 %v250
      %v361 = vpop.f32.mrb[0].mxu0
      %v362 = vadd.f32 %v228, %v361
      %v363 = vpop.f32.mrb[0].mxu0
      %v364 = vadd.f32 %v228, %v363
      %365 = vdwg.mxu0
      %366 = vst [vmem:[%s170] sm:$0xff] %v326
      %367 = vst [vmem:[%s170 + $0x8] sm:$0xff] %v328
      %368 = vst [vmem:[%s170 + $0x10] sm:$0xff] %v332
      %369 = vst [vmem:[%s170 + $0x18] sm:$0xff] %v334
      %370 = vst [vmem:[%s170 + $0x20] sm:$0xff] %v338
      %371 = vst [vmem:[%s170 + $0x28] sm:$0xff] %v340
      %372 = vst [vmem:[%s170 + $0x30] sm:$0xff] %v344
      %373 = vst [vmem:[%s170 + $0x38] sm:$0xff] %v346
      %374 = vst [vmem:[%s170 + $0x40] sm:$0xff] %v350
      %375 = vst [vmem:[%s170 + $0x48] sm:$0xff] %v352
      %376 = vst [vmem:[%s170 + $0x50] sm:$0xff] %v356
      %377 = vst [vmem:[%s170 + $0x58] sm:$0xff] %v358
      %378 = vst [vmem:[%s170 + $0x60] sm:$0x3f] %v362
      %379 = vst [vmem:[%s170 + $0x68] sm:$0x3f] %v364
      %p380 = scmp.lt.s32.totalorder %s14, 1
      %s381 = scalar_select %p380, %s14, 1
      %s382 = smul.addr %s381, 14
      %s383 = smul.addr %s382, 8
      %s384 = scalar_lea.vmem %s3, %s383
      // Predicated region
      $region33: #{rpn_classifier_forward.1} parent=31 // pred_check
        %p385 = pneg %p100
      $region34: #{rpn_classifier_forward.1} parent=31 // pred_check_branch
        %387 = sbr.rel (%p385) target = $region36
      $region35: #{rpn_classifier_forward.1} parent=31 // pred_region
        _
      $region36: #{rpn_classifier_forward.1} parent=31 // pred_fallthru
        _
    $region32: #{rpn_classifier_forward.1} parent=5 // pred_fallthru
      _
    %p388 = scmp.le.s32.totalorder 2, %s9
    // Predicated region
    $region37: #{rpn_classifier_forward.1} parent=5 // pred_check
      %p389 = pneg %p388
    $region38: #{rpn_classifier_forward.1} parent=5 // pred_check_branch
      %391 = sbr.rel (%p389) target = $region40
    $region39: #{rpn_classifier_forward.1} parent=5 // pred_region
      %s392 = ssub.s32 %s9, 2
      // Predicated region
      $region41: #{rpn_classifier_forward.1} parent=39 // pred_check
        %p393 = pneg %p106
      $region42: #{rpn_classifier_forward.1} parent=39 // pred_check_branch
        %395 = sbr.rel (%p393) target = $region44
      $region43: #{rpn_classifier_forward.1} parent=39 // pred_region
        %p396 = scmp.lt.s32.totalorder %s15, 1
        %s397 = scalar_select %p396, %s15, 1
        %s398 = smul.addr %s397, 14
        %s399 = smul.addr %s398, 8
        %s400 = scalar_lea.vmem %s3, %s399
      $region44: #{rpn_classifier_forward.1} parent=39 // pred_fallthru
        _
    $region40: #{rpn_classifier_forward.1} parent=5 // pred_fallthru
      _
  $region6: #{rpn_classifier_forward.1} parent=0 // loop_footer
    %s13 = sadd.s32 1, %s9
  $region7: #{rpn_classifier_forward.1} parent=0 // loop_footer_branch
    %8 = sbr.rel target = $region3
  $region8: #{rpn_classifier_forward.1} parent=0 // loop_exit
    _

</llo_original>
